<compile_context>
chip_gen: v7x
topology: tpu7x:2x2x1
jax: 0.10.0
libtpu: 0.0.40
codegen_flags: <defaults>
</compile_context>

<pallas_src>
import numpy as np
import jax
import jax.numpy as jnp
from jax import lax
from jax.experimental import pallas as pl
from jax.experimental.pallas import tpu as pltpu

# ---------------- config (small, consistent with the module) ----------------
B = 2              # batch
N_Q = 16           # query tokens (n)
N_KV = 8           # key/value tokens (m)
HIDDEN = 32        # hidden_size
NUM_HEADS = 2
HEAD_DIM = HIDDEN // NUM_HEADS


# ---------------- fused kernel: fused_proj + attention + proj ----------------
def cross_attn_kernel(qf_ref, kvf_ref, wpack_ref, out_ref, attn_ref):
    qf = qf_ref[...]                                  # (B*N_Q, C)
    kvf = kvf_ref[...]                                # (B*N_KV, C)

    # proj bias row (1, C) from the last packed slab (single hoisted broadcast)
    bias = wpack_ref[2 * NUM_HEADS][0:1, :]

    # Per-head pre-projections over ALL batches at once (dense MXU work,
    # no lane slicing).  th[h] = q @ (scale * P_h @ W_k_h^T),
    # vp[h] = kv @ (W_v_h @ W_proj_h).
    th, vp = [], []
    for h in range(NUM_HEADS):                        # static unroll
        th.append(jnp.dot(qf, wpack_ref[h],
                          preferred_element_type=jnp.float32))              # (B*N_Q, C)
        vp.append(jnp.dot(kvf, wpack_ref[NUM_HEADS + h],
                          preferred_element_type=jnp.float32))              # (B*N_KV, C)

    out_rows = []      # per batch (N_Q, C)
    attn_rows = []     # (b, h) order, each (N_Q, N_KV)
    for b in range(B):                                # static unroll
        rq = slice(b * N_Q, (b + 1) * N_Q)            # sublane-aligned row slices
        rk = slice(b * N_KV, (b + 1) * N_KV)
        kv_b = kvf[rk, :]
        acc = None
        for h in range(NUM_HEADS):                    # static unroll
            # sim = (q @ M_h) @ kv_b^T  == scale * q_h @ k_h^T
            sim = lax.dot_general(th[h][rq, :], kv_b, (((1,), (1,)), ((), ())),
                                  preferred_element_type=jnp.float32)       # (N_Q, N_KV)
            # softmax over key axis (exact reciprocal for the 2e-4 tolerance)
            m = jnp.max(sim, axis=-1, keepdims=True)
            e = jnp.exp(sim - m)
            a = e * pl.reciprocal(jnp.sum(e, axis=-1, keepdims=True), approx=False)
            attn_rows.append(a)
            # attn @ (kv_b @ (W_v_h @ W_proj_h)) == (attn @ v_h) @ W_proj_h
            c = jnp.dot(a, vp[h][rk, :], preferred_element_type=jnp.float32)  # (N_Q, C)
            acc = c if acc is None else acc + c
        out_rows.append(acc)

    # single lane-dense stores (sublane concat only, no lane relayout)
    out_ref[...] = jnp.concatenate(out_rows, axis=0) + bias                 # (B*N_Q, C)
    attn_ref[...] = jnp.concatenate(attn_rows, axis=0)                      # (B*H*N_Q, N_KV)

    # TODO(synk): mask / context_mask masking branches are not implemented
    #             (forward is exercised with mask=None, context_mask=None).


# ---------------- wrapper (grid=(), single invocation) ----------------
def cross_attention_forward(query, key_value, kparams):
    B_, N_, C_ = query.shape
    M_ = key_value.shape[1]
    qf = query.reshape(B_ * N_, C_)        # free contiguous reshapes
    kvf = key_value.reshape(B_ * M_, C_)

    vmem = lambda: pl.BlockSpec(memory_space=pltpu.MemorySpace.VMEM)
    out_flat, attn_flat = pl.pallas_call(
        cross_attn_kernel,
        out_shape=[jax.ShapeDtypeStruct((B_ * N_, C_), jnp.float32),
                   jax.ShapeDtypeStruct((B_ * NUM_HEADS * N_, M_), jnp.float32)],
        in_specs=[vmem(), vmem(), vmem()],
        out_specs=[vmem(), vmem()],
    )(qf, kvf, kparams["wpack"])

    out = out_flat.reshape(B_, N_, C_)
    attn = attn_flat.reshape(B_, NUM_HEADS, N_, M_)
    return out, attn


# ---------------- deterministic canonical parameters ----------------
def init_params(key):
    C = HIDDEN
    k0, k1, k2 = jax.random.split(key, 3)
    # stored already transposed relative to torch's nn.Linear weight layout
    w_kv = (jax.random.normal(k0, (C, 2 * C), jnp.float32) / np.sqrt(C)).astype(jnp.float32)
    w_proj = (jax.random.normal(k1, (C, C), jnp.float32) / np.sqrt(C)).astype(jnp.float32)
    b_proj = 0.1 * jax.random.normal(k2, (1, C), jnp.float32)
    return {"w_kv": w_kv, "w_proj": w_proj, "b_proj": b_proj}


# ---------------- offline parameter prep (once, not per call) ----------------
def prepare_params(p):
    """Pack per-head K-selector (scale folded in), fused V*proj panels and the
    proj bias into a single (2H+1, C, C) constant slab for the kernel."""
    C, D = HIDDEN, HEAD_DIM
    scale = jnp.float32(D ** (-0.5))
    w_kv, w_proj, b_proj = p["w_kv"], p["w_proj"], p["b_proj"]

    slabs = []
    for h in range(NUM_HEADS):
        w_k_h = w_kv[:, h * D:(h + 1) * D]                       # (C, D)
        m_h = jnp.zeros((C, C), jnp.float32)
        m_h = m_h.at[h * D:(h + 1) * D, :].set(scale * w_k_h.T)  # scale*P_h@W_k_h^T
        slabs.append(m_h)
    for h in range(NUM_HEADS):
        w_v_h = w_kv[:, C + h * D: C + (h + 1) * D]              # (C, D)
        wp_h = w_proj[h * D:(h + 1) * D, :]                      # (D, C)
        slabs.append(jnp.dot(w_v_h, wp_h))                       # fused V*proj (C, C)
    bias_slab = jnp.zeros((C, C), jnp.float32).at[0:1, :].set(b_proj)
    slabs.append(bias_slab)
    return {"wpack": jnp.stack(slabs, axis=0)}                   # (2H+1, C, C)


# ---------------- pure-JAX reference (mirrors torch forward, eval mode) ----------------
def reference_forward(query, key_value, p):
    B_, N_, C_ = query.shape
    kvp = jnp.matmul(key_value, p["w_kv"])                       # (B, M, 2C)
    key, val = kvp[..., :C_], kvp[..., C_:]

    def split_heads(x):  # 'b n (h d) -> b h n d'
        return x.reshape(B_, -1, NUM_HEADS, HEAD_DIM).transpose(0, 2, 1, 3)

    qh, kh, vh = split_heads(query), split_heads(key), split_heads(val)
    qh = qh * (HEAD_DIM ** (-0.5))
    sim = jnp.einsum("bhnd,bhmd->bhnm", qh, kh)
    attn = jax.nn.softmax(sim, axis=-1)
    out = jnp.einsum("bhnm,bhmd->bhnd", attn, vh)
    out = out.transpose(0, 2, 1, 3).reshape(B_, N_, C_)          # 'b h n d -> b n (h d)'
    out = jnp.matmul(out, p["w_proj"]) + p["b_proj"]
    return out, attn


if __name__ == "__main__":
    k_q, k_kv, k_par = jax.random.split(jax.random.PRNGKey(0), 3)
    query = jax.random.normal(k_q, (B, N_Q, HIDDEN), dtype=jnp.float32)
    key_value = jax.random.normal(k_kv, (B, N_KV, HIDDEN), dtype=jnp.float32)
    params = init_params(k_par)
    kparams = prepare_params(params)        # offline weight packing, done once

    out, attn = cross_attention_forward(query, key_value, kparams)
    out = jax.block_until_ready(out)
    attn = jax.block_until_ready(attn)

    ref_out, ref_attn = reference_forward(query, key_value, params)
    np.testing.assert_allclose(np.asarray(out), np.asarray(ref_out), rtol=2e-4, atol=2e-4)
    np.testing.assert_allclose(np.asarray(attn), np.asarray(ref_attn), rtol=2e-4, atol=2e-4)
    print("KERNEL_OK")
</pallas_src>

<mosaic_0001>
module attributes {stable_mosaic.version = 11 : i64} {
  func.func @cross_attn_kernel(%arg0: memref<32x32xf32, #tpu.memory_space<vmem>>, %arg1: memref<16x32xf32, #tpu.memory_space<vmem>>, %arg2: memref<5x32x32xf32, #tpu.memory_space<vmem>>, %arg3: memref<32x32xf32, #tpu.memory_space<vmem>>, %arg4: memref<64x8xf32, #tpu.memory_space<vmem>>) attributes {dimension_semantics = [], scalar_prefetch = 0 : i64, scratch_operands = 0 : i64, tpu.core_type = #tpu.core_type<tc>} {
    %c0 = arith.constant 0 : index
    %c0_0 = arith.constant 0 : index
    %0 = vector.load %arg0[%c0, %c0_0] : memref<32x32xf32, #tpu.memory_space<vmem>>, vector<32x32xf32>
    %c0_1 = arith.constant 0 : index
    %c0_2 = arith.constant 0 : index
    %1 = vector.load %arg1[%c0_1, %c0_2] : memref<16x32xf32, #tpu.memory_space<vmem>>, vector<16x32xf32>
    %c4 = arith.constant 4 : index
    %c0_3 = arith.constant 0 : index
    %c0_4 = arith.constant 0 : index
    %2 = vector.load %arg2[%c4, %c0_3, %c0_4] : memref<5x32x32xf32, #tpu.memory_space<vmem>>, vector<1x32x32xf32>
    %3 = vector.shape_cast %2 : vector<1x32x32xf32> to vector<32x32xf32>
    %4 = vector.extract_strided_slice %3 {offsets = [0, 0], sizes = [1, 32], strides = [1, 1]} : vector<32x32xf32> to vector<1x32xf32>
    %c0_5 = arith.constant 0 : index
    %c0_6 = arith.constant 0 : index
    %c0_7 = arith.constant 0 : index
    %5 = vector.load %arg2[%c0_5, %c0_6, %c0_7] : memref<5x32x32xf32, #tpu.memory_space<vmem>>, vector<1x32x32xf32>
    %6 = vector.shape_cast %5 : vector<1x32x32xf32> to vector<32x32xf32>
    %cst = arith.constant dense<0.000000e+00> : vector<32x32xf32>
    %7 = tpu.matmul %0, %6, %cst {dimension_numbers = #tpu.dot_dimension_numbers<[1], [0], [0], [1], [0, 0, 1, 1], [], []>} : vector<32x32xf32>, vector<32x32xf32>, vector<32x32xf32> -> vector<32x32xf32>
    %c2 = arith.constant 2 : index
    %c0_8 = arith.constant 0 : index
    %c0_9 = arith.constant 0 : index
    %8 = vector.load %arg2[%c2, %c0_8, %c0_9] : memref<5x32x32xf32, #tpu.memory_space<vmem>>, vector<1x32x32xf32>
    %9 = vector.shape_cast %8 : vector<1x32x32xf32> to vector<32x32xf32>
    %cst_10 = arith.constant dense<0.000000e+00> : vector<16x32xf32>
    %10 = tpu.matmul %1, %9, %cst_10 {dimension_numbers = #tpu.dot_dimension_numbers<[1], [0], [0], [1], [0, 0, 1, 1], [], []>} : vector<16x32xf32>, vector<32x32xf32>, vector<16x32xf32> -> vector<16x32xf32>
    %c1 = arith.constant 1 : index
    %c0_11 = arith.constant 0 : index
    %c0_12 = arith.constant 0 : index
    %11 = vector.load %arg2[%c1, %c0_11, %c0_12] : memref<5x32x32xf32, #tpu.memory_space<vmem>>, vector<1x32x32xf32>
    %12 = vector.shape_cast %11 : vector<1x32x32xf32> to vector<32x32xf32>
    %cst_13 = arith.constant dense<0.000000e+00> : vector<32x32xf32>
    %13 = tpu.matmul %0, %12, %cst_13 {dimension_numbers = #tpu.dot_dimension_numbers<[1], [0], [0], [1], [0, 0, 1, 1], [], []>} : vector<32x32xf32>, vector<32x32xf32>, vector<32x32xf32> -> vector<32x32xf32>
    %c3 = arith.constant 3 : index
    %c0_14 = arith.constant 0 : index
    %c0_15 = arith.constant 0 : index
    %14 = vector.load %arg2[%c3, %c0_14, %c0_15] : memref<5x32x32xf32, #tpu.memory_space<vmem>>, vector<1x32x32xf32>
    %15 = vector.shape_cast %14 : vector<1x32x32xf32> to vector<32x32xf32>
    %cst_16 = arith.constant dense<0.000000e+00> : vector<16x32xf32>
    %16 = tpu.matmul %1, %15, %cst_16 {dimension_numbers = #tpu.dot_dimension_numbers<[1], [0], [0], [1], [0, 0, 1, 1], [], []>} : vector<16x32xf32>, vector<32x32xf32>, vector<16x32xf32> -> vector<16x32xf32>
    %17 = vector.extract_strided_slice %1 {offsets = [0, 0], sizes = [8, 32], strides = [1, 1]} : vector<16x32xf32> to vector<8x32xf32>
    %18 = vector.extract_strided_slice %7 {offsets = [0, 0], sizes = [16, 32], strides = [1, 1]} : vector<32x32xf32> to vector<16x32xf32>
    %cst_17 = arith.constant dense<0.000000e+00> : vector<16x8xf32>
    %19 = tpu.matmul %18, %17, %cst_17 {dimension_numbers = #tpu.dot_dimension_numbers<[1], [1], [0], [0], [0, 0, 1, 0], [], []>} : vector<16x32xf32>, vector<8x32xf32>, vector<16x8xf32> -> vector<16x8xf32>
    %cst_18 = arith.constant dense<0xFF800000> : vector<16xf32>
    %20 = vector.multi_reduction <maximumf>, %19, %cst_18 [1] : vector<16x8xf32> to vector<16xf32>
    %21 = vector.shape_cast %20 : vector<16xf32> to vector<16x1xf32>
    %22 = vector.broadcast %21 : vector<16x1xf32> to vector<16x8xf32>
    %23 = arith.subf %19, %22 : vector<16x8xf32>
    %24 = math.exp %23 : vector<16x8xf32>
    %cst_19 = arith.constant dense<0.000000e+00> : vector<16xf32>
    %25 = vector.multi_reduction <add>, %24, %cst_19 [1] : vector<16x8xf32> to vector<16xf32>
    %26 = vector.shape_cast %25 : vector<16xf32> to vector<16x1xf32>
    %27 = tpu.reciprocal %26 : vector<16x1xf32> -> vector<16x1xf32>
    %28 = vector.broadcast %27 : vector<16x1xf32> to vector<16x8xf32>
    %29 = arith.mulf %24, %28 : vector<16x8xf32>
    %30 = vector.extract_strided_slice %10 {offsets = [0, 0], sizes = [8, 32], strides = [1, 1]} : vector<16x32xf32> to vector<8x32xf32>
    %cst_20 = arith.constant dense<0.000000e+00> : vector<16x32xf32>
    %31 = tpu.matmul %29, %30, %cst_20 {dimension_numbers = #tpu.dot_dimension_numbers<[1], [0], [0], [1], [0, 0, 1, 1], [], []>} : vector<16x8xf32>, vector<8x32xf32>, vector<16x32xf32> -> vector<16x32xf32>
    %32 = vector.extract_strided_slice %13 {offsets = [0, 0], sizes = [16, 32], strides = [1, 1]} : vector<32x32xf32> to vector<16x32xf32>
    %cst_21 = arith.constant dense<0.000000e+00> : vector<16x8xf32>
    %33 = tpu.matmul %32, %17, %cst_21 {dimension_numbers = #tpu.dot_dimension_numbers<[1], [1], [0], [0], [0, 0, 1, 0], [], []>} : vector<16x32xf32>, vector<8x32xf32>, vector<16x8xf32> -> vector<16x8xf32>
    %cst_22 = arith.constant dense<0xFF800000> : vector<16xf32>
    %34 = vector.multi_reduction <maximumf>, %33, %cst_22 [1] : vector<16x8xf32> to vector<16xf32>
    %35 = vector.shape_cast %34 : vector<16xf32> to vector<16x1xf32>
    %36 = vector.broadcast %35 : vector<16x1xf32> to vector<16x8xf32>
    %37 = arith.subf %33, %36 : vector<16x8xf32>
    %38 = math.exp %37 : vector<16x8xf32>
    %cst_23 = arith.constant dense<0.000000e+00> : vector<16xf32>
    %39 = vector.multi_reduction <add>, %38, %cst_23 [1] : vector<16x8xf32> to vector<16xf32>
    %40 = vector.shape_cast %39 : vector<16xf32> to vector<16x1xf32>
    %41 = tpu.reciprocal %40 : vector<16x1xf32> -> vector<16x1xf32>
    %42 = vector.broadcast %41 : vector<16x1xf32> to vector<16x8xf32>
    %43 = arith.mulf %38, %42 : vector<16x8xf32>
    %44 = vector.extract_strided_slice %16 {offsets = [0, 0], sizes = [8, 32], strides = [1, 1]} : vector<16x32xf32> to vector<8x32xf32>
    %cst_24 = arith.constant dense<0.000000e+00> : vector<16x32xf32>
    %45 = tpu.matmul %43, %44, %cst_24 {dimension_numbers = #tpu.dot_dimension_numbers<[1], [0], [0], [1], [0, 0, 1, 1], [], []>} : vector<16x8xf32>, vector<8x32xf32>, vector<16x32xf32> -> vector<16x32xf32>
    %46 = arith.addf %31, %45 : vector<16x32xf32>
    %47 = vector.extract_strided_slice %1 {offsets = [8, 0], sizes = [8, 32], strides = [1, 1]} : vector<16x32xf32> to vector<8x32xf32>
    %48 = vector.extract_strided_slice %7 {offsets = [16, 0], sizes = [16, 32], strides = [1, 1]} : vector<32x32xf32> to vector<16x32xf32>
    %cst_25 = arith.constant dense<0.000000e+00> : vector<16x8xf32>
    %49 = tpu.matmul %48, %47, %cst_25 {dimension_numbers = #tpu.dot_dimension_numbers<[1], [1], [0], [0], [0, 0, 1, 0], [], []>} : vector<16x32xf32>, vector<8x32xf32>, vector<16x8xf32> -> vector<16x8xf32>
    %cst_26 = arith.constant dense<0xFF800000> : vector<16xf32>
    %50 = vector.multi_reduction <maximumf>, %49, %cst_26 [1] : vector<16x8xf32> to vector<16xf32>
    %51 = vector.shape_cast %50 : vector<16xf32> to vector<16x1xf32>
    %52 = vector.broadcast %51 : vector<16x1xf32> to vector<16x8xf32>
    %53 = arith.subf %49, %52 : vector<16x8xf32>
    %54 = math.exp %53 : vector<16x8xf32>
    %cst_27 = arith.constant dense<0.000000e+00> : vector<16xf32>
    %55 = vector.multi_reduction <add>, %54, %cst_27 [1] : vector<16x8xf32> to vector<16xf32>
    %56 = vector.shape_cast %55 : vector<16xf32> to vector<16x1xf32>
    %57 = tpu.reciprocal %56 : vector<16x1xf32> -> vector<16x1xf32>
    %58 = vector.broadcast %57 : vector<16x1xf32> to vector<16x8xf32>
    %59 = arith.mulf %54, %58 : vector<16x8xf32>
    %60 = vector.extract_strided_slice %10 {offsets = [8, 0], sizes = [8, 32], strides = [1, 1]} : vector<16x32xf32> to vector<8x32xf32>
    %cst_28 = arith.constant dense<0.000000e+00> : vector<16x32xf32>
    %61 = tpu.matmul %59, %60, %cst_28 {dimension_numbers = #tpu.dot_dimension_numbers<[1], [0], [0], [1], [0, 0, 1, 1], [], []>} : vector<16x8xf32>, vector<8x32xf32>, vector<16x32xf32> -> vector<16x32xf32>
    %62 = vector.extract_strided_slice %13 {offsets = [16, 0], sizes = [16, 32], strides = [1, 1]} : vector<32x32xf32> to vector<16x32xf32>
    %cst_29 = arith.constant dense<0.000000e+00> : vector<16x8xf32>
    %63 = tpu.matmul %62, %47, %cst_29 {dimension_numbers = #tpu.dot_dimension_numbers<[1], [1], [0], [0], [0, 0, 1, 0], [], []>} : vector<16x32xf32>, vector<8x32xf32>, vector<16x8xf32> -> vector<16x8xf32>
    %cst_30 = arith.constant dense<0xFF800000> : vector<16xf32>
    %64 = vector.multi_reduction <maximumf>, %63, %cst_30 [1] : vector<16x8xf32> to vector<16xf32>
    %65 = vector.shape_cast %64 : vector<16xf32> to vector<16x1xf32>
    %66 = vector.broadcast %65 : vector<16x1xf32> to vector<16x8xf32>
    %67 = arith.subf %63, %66 : vector<16x8xf32>
    %68 = math.exp %67 : vector<16x8xf32>
    %cst_31 = arith.constant dense<0.000000e+00> : vector<16xf32>
    %69 = vector.multi_reduction <add>, %68, %cst_31 [1] : vector<16x8xf32> to vector<16xf32>
    %70 = vector.shape_cast %69 : vector<16xf32> to vector<16x1xf32>
    %71 = tpu.reciprocal %70 : vector<16x1xf32> -> vector<16x1xf32>
    %72 = vector.broadcast %71 : vector<16x1xf32> to vector<16x8xf32>
    %73 = arith.mulf %68, %72 : vector<16x8xf32>
    %74 = vector.extract_strided_slice %16 {offsets = [8, 0], sizes = [8, 32], strides = [1, 1]} : vector<16x32xf32> to vector<8x32xf32>
    %cst_32 = arith.constant dense<0.000000e+00> : vector<16x32xf32>
    %75 = tpu.matmul %73, %74, %cst_32 {dimension_numbers = #tpu.dot_dimension_numbers<[1], [0], [0], [1], [0, 0, 1, 1], [], []>} : vector<16x8xf32>, vector<8x32xf32>, vector<16x32xf32> -> vector<16x32xf32>
    %76 = arith.addf %61, %75 : vector<16x32xf32>
    %77 = tpu.concatenate %46, %76 in 0 : vector<16x32xf32>, vector<16x32xf32> -> vector<32x32xf32>
    %78 = vector.broadcast %4 : vector<1x32xf32> to vector<32x32xf32>
    %79 = arith.addf %77, %78 : vector<32x32xf32>
    %c0_33 = arith.constant 0 : index
    %c0_34 = arith.constant 0 : index
    %80 = vector.load %arg3[%c0_33, %c0_34] : memref<32x32xf32, #tpu.memory_space<vmem>>, vector<32x32xf32>
    tpu.vector_store %arg3[%c0_33, %c0_34], %79 {strides = array<i32>} : memref<32x32xf32, #tpu.memory_space<vmem>>, vector<32x32xf32>,
    %81 = tpu.concatenate %29, %43, %59, %73 in 0 : vector<16x8xf32>, vector<16x8xf32>, vector<16x8xf32>, vector<16x8xf32> -> vector<64x8xf32>
    %c0_35 = arith.constant 0 : index
    %c0_36 = arith.constant 0 : index
    %82 = vector.load %arg4[%c0_35, %c0_36] : memref<64x8xf32, #tpu.memory_space<vmem>>, vector<64x8xf32>
    tpu.vector_store %arg4[%c0_35, %c0_36], %81 {strides = array<i32>} : memref<64x8xf32, #tpu.memory_space<vmem>>, vector<64x8xf32>,
    return
  }
}

</mosaic_0001>

<llo_original>
// kernel: tpu_custom_call.1
$region0: #{tpu_custom_call.1}
  #allocation0 [shape = 'u32[]', space=smem, size = 0x4, offset = 0x4, fixed_abs, tag = 'smem constant byte address 0x4 - core index']
  #allocation1 [shape = 'u32[144,128]{1,0:T(1,128)}', space=vmem, size = 0x12000, scoped, tag = 'internal scratch']
  %s0 = inlined_call_operand.hbm [shape: f32[32,32], index: 0, kind: input, shape index: {}]
  %s1 = inlined_call_operand.hbm [shape: f32[16,32], index: 1, kind: input, shape index: {}]
  %s2 = inlined_call_operand.hbm [shape: f32[5,32,32], index: 2, kind: input, shape index: {}]
  %s3 = inlined_call_operand.hbm [shape: f32[32,32], index: 3, kind: output, shape index: {0}]
  %s4 = inlined_call_operand.vmem [shape: f32[64,8], index: 4, kind: output, shape index: {1}]
  %5 = xla_tuple %s3, %s4
  %s6 = sld [smem:[#allocation0]]
  $region42: #{tpu_custom_call.1} parent=0
    _
  %s8 = ssub.s32 1, %s6
  %s9 = scalar_select 0, %s8, %s6
  $region1: #{tpu_custom_call.1} parent=0
    #allocation2 [shape = 'u8[16384]{0}', space=vmem, size = 0x4000, scoped, tag = 'input window, operand 0, single buffered']
    #allocation3 [shape = 's32[1]{0}', space=sflag, size = 0x4, scoped, tag = 'scoped memory for tpu_custom_call.1']
    #allocation4 [shape = 's32[1]{0}', space=sflag, size = 0x4, scoped, tag = 'scoped memory for tpu_custom_call.1']
    #allocation5 [shape = 'u8[8192]{0}', space=vmem, size = 0x2000, scoped, tag = 'input window, operand 1, single buffered']
    #allocation6 [shape = 's32[1]{0}', space=sflag, size = 0x4, scoped, tag = 'scoped memory for tpu_custom_call.1']
    #allocation7 [shape = 'u8[81920]{0}', space=vmem, size = 0x14000, scoped, tag = 'input window, operand 2, single buffered']
    #allocation8 [shape = 'u8[16384]{0}', space=vmem, size = 0x4000, scoped, tag = 'output window, operand 0, single buffered']
    %10 = vsyncpa [#allocation3], 0
    %11 = vsyncpa [#allocation6], 0
    %12 = vsyncpa [#allocation4], 0
    // Predicated region
    $region2: #{tpu_custom_call.1} parent=1 // pred_check
      _
    $region3: #{tpu_custom_call.1} parent=1 // pred_check_branch
      %14 = sbr.rel (0) target = $region5
    $region4: #{tpu_custom_call.1} parent=1 // pred_region
      %s16 = ssub.s32 512, 512
      %17 = vsyncadd [#allocation3], %s16
      %s18 = sshll.u32 [#allocation2], 4
      %s19 = int_to_ptr.vmem [resolvable:$true] %s18
      %24 = dma.hbm_to_vmem [thread:$0]  %s0, 512, %s19, [#allocation3], 128, 128, 8
    $region5: #{tpu_custom_call.1} parent=1 // pred_fallthru
      _
    // Predicated region
    $region6: #{tpu_custom_call.1} parent=1 // pred_check
      _
    $region7: #{tpu_custom_call.1} parent=1 // pred_check_branch
      %26 = sbr.rel (0) target = $region9
    $region8: #{tpu_custom_call.1} parent=1 // pred_region
      %s28 = ssub.s32 256, 256
      %29 = vsyncadd [#allocation6], %s28
      %s30 = sshll.u32 [#allocation5], 4
      %s31 = int_to_ptr.vmem [resolvable:$true] %s30
      %36 = dma.hbm_to_vmem [thread:$0]  %s1, 256, %s31, [#allocation6], 128, 128, 8
    $region9: #{tpu_custom_call.1} parent=1 // pred_fallthru
      _
    // Predicated region
    $region10: #{tpu_custom_call.1} parent=1 // pred_check
      _
    $region11: #{tpu_custom_call.1} parent=1 // pred_check_branch
      %38 = sbr.rel (0) target = $region13
    $region12: #{tpu_custom_call.1} parent=1 // pred_region
      %s40 = ssub.s32 2560, 2560
      %41 = vsyncadd [#allocation6], %s40
      %s42 = sshll.u32 [#allocation7], 4
      %s43 = int_to_ptr.vmem [resolvable:$true] %s42
      %48 = dma.hbm_to_vmem [thread:$0]  %s2, 2560, %s43, [#allocation6], 128, 128, 8
    $region13: #{tpu_custom_call.1} parent=1 // pred_fallthru
      _
    // Predicated region
    $region14: #{tpu_custom_call.1} parent=1 // pred_check
      _
    $region15: #{tpu_custom_call.1} parent=1 // pred_check_branch
      %50 = sbr.rel (0) target = $region17
    $region16: #{tpu_custom_call.1} parent=1 // pred_region
      %51 = dma.done [#allocation3], 512
    $region17: #{tpu_custom_call.1} parent=1 // pred_fallthru
      _
    // Predicated region
    $region18: #{tpu_custom_call.1} parent=1 // pred_check
      _
    $region19: #{tpu_custom_call.1} parent=1 // pred_check_branch
      %53 = sbr.rel (0) target = $region21
    $region20: #{tpu_custom_call.1} parent=1 // pred_region
      %54 = dma.done [#allocation6], 256
    $region21: #{tpu_custom_call.1} parent=1 // pred_fallthru
      _
    // Predicated region
    $region22: #{tpu_custom_call.1} parent=1 // pred_check
      _
    $region23: #{tpu_custom_call.1} parent=1 // pred_check_branch
      %56 = sbr.rel (0) target = $region25
    $region24: #{tpu_custom_call.1} parent=1 // pred_region
      %57 = dma.done [#allocation6], 2560
    $region25: #{tpu_custom_call.1} parent=1 // pred_fallthru
      _
    %v58 = vld [vmem:[#allocation2] sm:$0xff]
    %v59 = vld [vmem:[#allocation2 + $0x8] sm:$0xff]
    %v60 = vld [vmem:[#allocation2 + $0x10] sm:$0xff]
    %v61 = vld [vmem:[#allocation2 + $0x18] sm:$0xff]
    %v62 = vld [vmem:[#allocation5] sm:$0xff]
    %v63 = vld [vmem:[#allocation5 + $0x8] sm:$0xff]
    %s64 = scalar_lea.vmem [#allocation7], 128
    %v65 = vld [vmem:[%s64] sm:$0xff]
    %v66 = vld [vmem:[#allocation7] sm:$0xff]
    %v67 = vld [vmem:[#allocation7 + $0x8] sm:$0xff]
    %v68 = vld [vmem:[#allocation7 + $0x10] sm:$0xff]
    %v69 = vld [vmem:[#allocation7 + $0x18] sm:$0xff]
    %vm70 = vcmask 261120
    %v72 = vsel %vm70, %v58, 0
    %v75 = vsel %vm70, %v59, 0
    %v78 = vsel %vm70, %v60, 0
    %v81 = vsel %vm70, %v61, 0
    %83 = vmatprep.subr.mxu0 0.0
    %84 = vmatpush1.msra.mxu0 %v66
    %85 = vmatprep.subr.mxu0 0.0
    %86 = vmatpush1.msra.mxu0 %v67
    %87 = vmatprep.subr.mxu0 0.0
    %88 = vmatpush1.msra.mxu0 %v68
    %89 = vmatprep.subr.mxu0 0.0
    %90 = vmatpush1.msra.mxu0 %v69
    %91 = vmatprep.subr.mxu0 0.0
    %92 = vmatpush1.msra.mxu0 0.0
    %93 = vmatprep.subr.mxu0 0.0
    %94 = vmatpush1.msra.mxu0 0.0
    %95 = vmatprep.subr.mxu0 0.0
    %96 = vmatpush1.msra.mxu0 0.0
    %97 = vmatprep.subr.mxu0 0.0
    %98 = vmatpush1.msra.mxu0 0.0
    %99 = vmatprep.subr.mxu0 0.0
    %100 = vmatpush1.msra.mxu0 0.0
    %101 = vmatprep.subr.mxu0 0.0
    %102 = vmatpush1.msra.mxu0 0.0
    %103 = vmatprep.subr.mxu0 0.0
    %104 = vmatpush1.msra.mxu0 0.0
    %105 = vmatprep.subr.mxu0 0.0
    %106 = vmatpush1.msra.mxu0 0.0
    %107 = vmatprep.subr.mxu0 0.0
    %108 = vmatpush1.msra.mxu0 0.0
    %109 = vmatprep.subr.mxu0 0.0
    %110 = vmatpush1.msra.mxu0 0.0
    %111 = vmatprep.subr.mxu0 0.0
    %112 = vmatpush1.msra.mxu0 0.0
    %113 = vmatprep.subr.mxu0 0.0
    %114 = vmatpush1.msra.mxu0 0.0
    %115 = vmatprep.subr.mxu0 0.0
    %116 = vmatpush1.msra.mxu0 0.0
    %117 = vmatprep.subr.mxu0 0.0
    %118 = vmatpush1.msra.mxu0 0.0
    %119 = vmatprep.subr.mxu0 0.0
    %120 = vmatpush1.msra.mxu0 0.0
    %121 = vmatprep.subr.mxu0 0.0
    %122 = vmatpush1.msra.mxu0 0.0
    %123 = vmatprep.subr.mxu0 0.0
    %124 = vmatpush1.msra.mxu0 0.0
    %125 = vmatprep.subr.mxu0 0.0
    %126 = vmatpush1.msra.mxu0 0.0
    %127 = vmatprep.subr.mxu0 0.0
    %128 = vmatpush1.msra.mxu0 0.0
    %129 = vmatprep.subr.mxu0 0.0
    %130 = vmatpush1.msra.mxu0 0.0
    %131 = vmatprep.subr.mxu0 0.0
    %132 = vmatpush1.msra.mxu0 0.0
    %133 = vmatprep.subr.mxu0 0.0
    %134 = vmatpush1.msra.mxu0 0.0
    %135 = vmatprep.subr.mxu0 0.0
    %136 = vmatpush1.msra.mxu0 0.0
    %137 = vmatprep.subr.mxu0 0.0
    %138 = vmatpush1.msra.mxu0 0.0
    %139 = vmatprep.subr.mxu0 0.0
    %140 = vmatpush1.msra.mxu0 0.0
    %141 = vmatprep.subr.mxu0 0.0
    %142 = vmatpush1.msra.mxu0 0.0
    %143 = vmatprep.subr.mxu0 0.0
    %144 = vmatpush1.msra.mxu0 0.0
    %145 = vmatprep.subr.mxu0 0.0
    %146 = vmatpush1.msra.mxu0 0.0
    %147 = vmatprep.mubr.f32.mxu0 0.0
    %148 = vmatmul.mubr.f32.gmra.mrb[0].mxu0 %v72
    %v149 = vpop.f32.mrb[0].mxu0
    %v150 = vadd.f32 0.0, %v149
    %v151 = vpop.f32.mrb[0].mxu0
    %152 = vmatprep.mubr.f32.mxu0 0.0
    %153 = vmatmul.mubr.f32.gmra.mrb[0].mxu0 %v75
    %v154 = vpop.f32.mrb[0].mxu0
    %v155 = vadd.f32 0.0, %v154
    %v156 = vpop.f32.mrb[0].mxu0
    %157 = vmatprep.mubr.f32.mxu0 0.0
    %158 = vmatmul.mubr.f32.gmra.mrb[0].mxu0 %v78
    %v159 = vpop.f32.mrb[0].mxu0
    %v160 = vadd.f32 0.0, %v159
    %v161 = vpop.f32.mrb[0].mxu0
    %162 = vmatprep.mubr.f32.mxu0 0.0
    %163 = vmatmul.mubr.f32.gmra.mrb[0].mxu0 %v81
    %v164 = vpop.f32.mrb[0].mxu0
    %v165 = vadd.f32 0.0, %v164
    %v166 = vpop.f32.mrb[0].mxu0
    %167 = vdwg.mxu0
    %s168 = scalar_lea.vmem [#allocation7], 64
    %v169 = vld [vmem:[%s168] sm:$0xff]
    %v170 = vld [vmem:[%s168 + $0x8] sm:$0xff]
    %v171 = vld [vmem:[%s168 + $0x10] sm:$0xff]
    %v172 = vld [vmem:[%s168 + $0x18] sm:$0xff]
    %v174 = vsel %vm70, %v62, 0
    %v177 = vsel %vm70, %v63, 0
    %179 = vmatprep.subr.mxu0 0.0
    %180 = vmatpush1.msra.mxu0 %v169
    %181 = vmatprep.subr.mxu0 0.0
    %182 = vmatpush1.msra.mxu0 %v170
    %183 = vmatprep.subr.mxu0 0.0
    %184 = vmatpush1.msra.mxu0 %v171
    %185 = vmatprep.subr.mxu0 0.0
    %186 = vmatpush1.msra.mxu0 %v172
    %187 = vmatprep.subr.mxu0 0.0
    %188 = vmatpush1.msra.mxu0 0.0
    %189 = vmatprep.subr.mxu0 0.0
    %190 = vmatpush1.msra.mxu0 0.0
    %191 = vmatprep.subr.mxu0 0.0
    %192 = vmatpush1.msra.mxu0 0.0
    %193 = vmatprep.subr.mxu0 0.0
    %194 = vmatpush1.msra.mxu0 0.0
    %195 = vmatprep.subr.mxu0 0.0
    %196 = vmatpush1.msra.mxu0 0.0
    %197 = vmatprep.subr.mxu0 0.0
    %198 = vmatpush1.msra.mxu0 0.0
    %199 = vmatprep.subr.mxu0 0.0
    %200 = vmatpush1.msra.mxu0 0.0
    %201 = vmatprep.subr.mxu0 0.0
    %202 = vmatpush1.msra.mxu0 0.0
    %203 = vmatprep.subr.mxu0 0.0
    %204 = vmatpush1.msra.mxu0 0.0
    %205 = vmatprep.subr.mxu0 0.0
    %206 = vmatpush1.msra.mxu0 0.0
    %207 = vmatprep.subr.mxu0 0.0
    %208 = vmatpush1.msra.mxu0 0.0
    %209 = vmatprep.subr.mxu0 0.0
    %210 = vmatpush1.msra.mxu0 0.0
    %211 = vmatprep.subr.mxu0 0.0
    %212 = vmatpush1.msra.mxu0 0.0
    %213 = vmatprep.subr.mxu0 0.0
    %214 = vmatpush1.msra.mxu0 0.0
    %215 = vmatprep.subr.mxu0 0.0
    %216 = vmatpush1.msra.mxu0 0.0
    %217 = vmatprep.subr.mxu0 0.0
    %218 = vmatpush1.msra.mxu0 0.0
    %219 = vmatprep.subr.mxu0 0.0
    %220 = vmatpush1.msra.mxu0 0.0
    %221 = vmatprep.subr.mxu0 0.0
    %222 = vmatpush1.msra.mxu0 0.0
    %223 = vmatprep.subr.mxu0 0.0
    %224 = vmatpush1.msra.mxu0 0.0
    %225 = vmatprep.subr.mxu0 0.0
    %226 = vmatpush1.msra.mxu0 0.0
    %227 = vmatprep.subr.mxu0 0.0
    %228 = vmatpush1.msra.mxu0 0.0
    %229 = vmatprep.subr.mxu0 0.0
    %230 = vmatpush1.msra.mxu0 0.0
    %231 = vmatprep.subr.mxu0 0.0
    %232 = vmatpush1.msra.mxu0 0.0
    %233 = vmatprep.subr.mxu0 0.0
    %234 = vmatpush1.msra.mxu0 0.0
    %235 = vmatprep.subr.mxu0 0.0
    %236 = vmatpush1.msra.mxu0 0.0
    %237 = vmatprep.subr.mxu0 0.0
    %238 = vmatpush1.msra.mxu0 0.0
    %239 = vmatprep.subr.mxu0 0.0
    %240 = vmatpush1.msra.mxu0 0.0
    %241 = vmatprep.subr.mxu0 0.0
    %242 = vmatpush1.msra.mxu0 0.0
    %243 = vmatprep.mubr.f32.mxu0 0.0
    %244 = vmatmul.mubr.f32.gmra.mrb[0].mxu0 %v174
    %v245 = vpop.f32.mrb[0].mxu0
    %v246 = vadd.f32 0.0, %v245
    %v247 = vpop.f32.mrb[0].mxu0
    %248 = vmatprep.mubr.f32.mxu0 0.0
    %249 = vmatmul.mubr.f32.gmra.mrb[0].mxu0 %v177
    %v250 = vpop.f32.mrb[0].mxu0
    %v251 = vadd.f32 0.0, %v250
    %v252 = vpop.f32.mrb[0].mxu0
    %253 = vdwg.mxu0
    %s254 = scalar_lea.vmem [#allocation7], 32
    %v255 = vld [vmem:[%s254] sm:$0xff]
    %v256 = vld [vmem:[%s254 + $0x8] sm:$0xff]
    %v257 = vld [vmem:[%s254 + $0x10] sm:$0xff]
    %v258 = vld [vmem:[%s254 + $0x18] sm:$0xff]
    %259 = vmatprep.subr.mxu0 0.0
    %260 = vmatpush1.msra.mxu0 %v255
    %261 = vmatprep.subr.mxu0 0.0
    %262 = vmatpush1.msra.mxu0 %v256
    %263 = vmatprep.subr.mxu0 0.0
    %264 = vmatpush1.msra.mxu0 %v257
    %265 = vmatprep.subr.mxu0 0.0
    %266 = vmatpush1.msra.mxu0 %v258
    %267 = vmatprep.subr.mxu0 0.0
    %268 = vmatpush1.msra.mxu0 0.0
    %269 = vmatprep.subr.mxu0 0.0
    %270 = vmatpush1.msra.mxu0 0.0
    %271 = vmatprep.subr.mxu0 0.0
    %272 = vmatpush1.msra.mxu0 0.0
    %273 = vmatprep.subr.mxu0 0.0
    %274 = vmatpush1.msra.mxu0 0.0
    %275 = vmatprep.subr.mxu0 0.0
    %276 = vmatpush1.msra.mxu0 0.0
    %277 = vmatprep.subr.mxu0 0.0
    %278 = vmatpush1.msra.mxu0 0.0
    %279 = vmatprep.subr.mxu0 0.0
    %280 = vmatpush1.msra.mxu0 0.0
    %281 = vmatprep.subr.mxu0 0.0
    %282 = vmatpush1.msra.mxu0 0.0
    %283 = vmatprep.subr.mxu0 0.0
    %284 = vmatpush1.msra.mxu0 0.0
    %285 = vmatprep.subr.mxu0 0.0
    %286 = vmatpush1.msra.mxu0 0.0
    %287 = vmatprep.subr.mxu0 0.0
    %288 = vmatpush1.msra.mxu0 0.0
    %289 = vmatprep.subr.mxu0 0.0
    %290 = vmatpush1.msra.mxu0 0.0
    %291 = vmatprep.subr.mxu0 0.0
    %292 = vmatpush1.msra.mxu0 0.0
    %293 = vmatprep.subr.mxu0 0.0
    %294 = vmatpush1.msra.mxu0 0.0
    %295 = vmatprep.subr.mxu0 0.0
    %296 = vmatpush1.msra.mxu0 0.0
    %297 = vmatprep.subr.mxu0 0.0
    %298 = vmatpush1.msra.mxu0 0.0
    %299 = vmatprep.subr.mxu0 0.0
    %300 = vmatpush1.msra.mxu0 0.0
    %301 = vmatprep.subr.mxu0 0.0
    %302 = vmatpush1.msra.mxu0 0.0
    %303 = vmatprep.subr.mxu0 0.0
    %304 = vmatpush1.msra.mxu0 0.0
    %305 = vmatprep.subr.mxu0 0.0
    %306 = vmatpush1.msra.mxu0 0.0
    %307 = vmatprep.subr.mxu0 0.0
    %308 = vmatpush1.msra.mxu0 0.0
    %309 = vmatprep.subr.mxu0 0.0
    %310 = vmatpush1.msra.mxu0 0.0
    %311 = vmatprep.subr.mxu0 0.0
    %312 = vmatpush1.msra.mxu0 0.0
    %313 = vmatprep.subr.mxu0 0.0
    %314 = vmatpush1.msra.mxu0 0.0
    %315 = vmatprep.subr.mxu0 0.0
    %316 = vmatpush1.msra.mxu0 0.0
    %317 = vmatprep.subr.mxu0 0.0
    %318 = vmatpush1.msra.mxu0 0.0
    %319 = vmatprep.subr.mxu0 0.0
    %320 = vmatpush1.msra.mxu0 0.0
    %321 = vmatprep.subr.mxu0 0.0
    %322 = vmatpush1.msra.mxu0 0.0
    %323 = vmatprep.mubr.f32.mxu0 0.0
    %324 = vmatmul.mubr.f32.gmra.mrb[0].mxu0 %v72
    %v325 = vpop.f32.mrb[0].mxu0
    %v326 = vadd.f32 0.0, %v325
    %v327 = vpop.f32.mrb[0].mxu0
    %328 = vmatprep.mubr.f32.mxu0 0.0
    %329 = vmatmul.mubr.f32.gmra.mrb[0].mxu0 %v75
    %v330 = vpop.f32.mrb[0].mxu0
    %v331 = vadd.f32 0.0, %v330
    %v332 = vpop.f32.mrb[0].mxu0
    %333 = vmatprep.mubr.f32.mxu0 0.0
    %334 = vmatmul.mubr.f32.gmra.mrb[0].mxu0 %v78
    %v335 = vpop.f32.mrb[0].mxu0
    %v336 = vadd.f32 0.0, %v335
    %v337 = vpop.f32.mrb[0].mxu0
    %338 = vmatprep.mubr.f32.mxu0 0.0
    %339 = vmatmul.mubr.f32.gmra.mrb[0].mxu0 %v81
    %v340 = vpop.f32.mrb[0].mxu0
    %v341 = vadd.f32 0.0, %v340
    %v342 = vpop.f32.mrb[0].mxu0
    %343 = vdwg.mxu0
    %s344 = scalar_lea.vmem [#allocation7], 96
    %v345 = vld [vmem:[%s344] sm:$0xff]
    %v346 = vld [vmem:[%s344 + $0x8] sm:$0xff]
    %v347 = vld [vmem:[%s344 + $0x10] sm:$0xff]
    %v348 = vld [vmem:[%s344 + $0x18] sm:$0xff]
    %349 = vmatprep.subr.mxu0 0.0
    %350 = vmatpush1.msra.mxu0 %v345
    %351 = vmatprep.subr.mxu0 0.0
    %352 = vmatpush1.msra.mxu0 %v346
    %353 = vmatprep.subr.mxu0 0.0
    %354 = vmatpush1.msra.mxu0 %v347
    %355 = vmatprep.subr.mxu0 0.0
    %356 = vmatpush1.msra.mxu0 %v348
    %357 = vmatprep.subr.mxu0 0.0
    %358 = vmatpush1.msra.mxu0 0.0
    %359 = vmatprep.subr.mxu0 0.0
    %360 = vmatpush1.msra.mxu0 0.0
    %361 = vmatprep.subr.mxu0 0.0
    %362 = vmatpush1.msra.mxu0 0.0
    %363 = vmatprep.subr.mxu0 0.0
    %364 = vmatpush1.msra.mxu0 0.0
    %365 = vmatprep.subr.mxu0 0.0
    %366 = vmatpush1.msra.mxu0 0.0
    %367 = vmatprep.subr.mxu0 0.0
    %368 = vmatpush1.msra.mxu0 0.0
    %369 = vmatprep.subr.mxu0 0.0
    %370 = vmatpush1.msra.mxu0 0.0
    %371 = vmatprep.subr.mxu0 0.0
    %372 = vmatpush1.msra.mxu0 0.0
    %373 = vmatprep.subr.mxu0 0.0
    %374 = vmatpush1.msra.mxu0 0.0
    %375 = vmatprep.subr.mxu0 0.0
    %376 = vmatpush1.msra.mxu0 0.0
    %377 = vmatprep.subr.mxu0 0.0
    %378 = vmatpush1.msra.mxu0 0.0
    %379 = vmatprep.subr.mxu0 0.0
    %380 = vmatpush1.msra.mxu0 0.0
    %381 = vmatprep.subr.mxu0 0.0
    %382 = vmatpush1.msra.mxu0 0.0
    %383 = vmatprep.subr.mxu0 0.0
    %384 = vmatpush1.msra.mxu0 0.0
    %385 = vmatprep.subr.mxu0 0.0
    %386 = vmatpush1.msra.mxu0 0.0
    %387 = vmatprep.subr.mxu0 0.0
    %388 = vmatpush1.msra.mxu0 0.0
    %389 = vmatprep.subr.mxu0 0.0
    %390 = vmatpush1.msra.mxu0 0.0
    %391 = vmatprep.subr.mxu0 0.0
    %392 = vmatpush1.msra.mxu0 0.0
    %393 = vmatprep.subr.mxu0 0.0
    %394 = vmatpush1.msra.mxu0 0.0
    %395 = vmatprep.subr.mxu0 0.0
    %396 = vmatpush1.msra.mxu0 0.0
    %397 = vmatprep.subr.mxu0 0.0
    %398 = vmatpush1.msra.mxu0 0.0
    %399 = vmatprep.subr.mxu0 0.0
    %400 = vmatpush1.msra.mxu0 0.0
    %401 = vmatprep.subr.mxu0 0.0
    %402 = vmatpush1.msra.mxu0 0.0
    %403 = vmatprep.subr.mxu0 0.0
    %404 = vmatpush1.msra.mxu0 0.0
    %405 = vmatprep.subr.mxu0 0.0
    %406 = vmatpush1.msra.mxu0 0.0
    %407 = vmatprep.subr.mxu0 0.0
    %408 = vmatpush1.msra.mxu0 0.0
    %409 = vmatprep.subr.mxu0 0.0
    %410 = vmatpush1.msra.mxu0 0.0
    %411 = vmatprep.subr.mxu0 0.0
    %412 = vmatpush1.msra.mxu0 0.0
    %413 = vmatprep.mubr.f32.mxu0 0.0
    %414 = vmatmul.mubr.f32.gmra.mrb[0].mxu0 %v174
    %v415 = vpop.f32.mrb[0].mxu0
    %v416 = vadd.f32 0.0, %v415
    %v417 = vpop.f32.mrb[0].mxu0
    %418 = vmatprep.mubr.f32.mxu0 0.0
    %419 = vmatmul.mubr.f32.gmra.mrb[0].mxu0 %v177
    %v420 = vpop.f32.mrb[0].mxu0
    %v421 = vadd.f32 0.0, %v420
    %v422 = vpop.f32.mrb[0].mxu0
    %423 = vdwg.mxu0
    %v425 = vsel %vm70, %v150, 0
    %v428 = vsel %vm70, %v155, 0
    %430 = vmatprep.subr.mxu0 0.0
    %431 = vmatpush1.xpose.msra.mxu0 %v174
    %432 = vmatprep.subr.mxu0 0.0
    %433 = vmatpush1.xpose.msra.mxu0 0.0
    %434 = vmatprep.subr.mxu0 0.0
    %435 = vmatpush1.xpose.msra.mxu0 0.0
    %436 = vmatprep.subr.mxu0 0.0
    %437 = vmatpush1.xpose.msra.mxu0 0.0
    %438 = vmatprep.subr.mxu0 0.0
    %439 = vmatpush1.xpose.msra.mxu0 0.0
    %440 = vmatprep.subr.mxu0 0.0
    %441 = vmatpush1.xpose.msra.mxu0 0.0
    %442 = vmatprep.subr.mxu0 0.0
    %443 = vmatpush1.xpose.msra.mxu0 0.0
    %444 = vmatprep.subr.mxu0 0.0
    %445 = vmatpush1.xpose.msra.mxu0 0.0
    %446 = vmatprep.subr.mxu0 0.0
    %447 = vmatpush1.xpose.msra.mxu0 0.0
    %448 = vmatprep.subr.mxu0 0.0
    %449 = vmatpush1.xpose.msra.mxu0 0.0
    %450 = vmatprep.subr.mxu0 0.0
    %451 = vmatpush1.xpose.msra.mxu0 0.0
    %452 = vmatprep.subr.mxu0 0.0
    %453 = vmatpush1.xpose.msra.mxu0 0.0
    %454 = vmatprep.subr.mxu0 0.0
    %455 = vmatpush1.xpose.msra.mxu0 0.0
    %456 = vmatprep.subr.mxu0 0.0
    %457 = vmatpush1.xpose.msra.mxu0 0.0
    %458 = vmatprep.subr.mxu0 0.0
    %459 = vmatpush1.xpose.msra.mxu0 0.0
    %460 = vmatprep.subr.mxu0 0.0
    %461 = vmatpush1.xpose.msra.mxu0 0.0
    %462 = vmatprep.subr.mxu0 0.0
    %463 = vmatpush1.xpose.msra.mxu0 0.0
    %464 = vmatprep.subr.mxu0 0.0
    %465 = vmatpush1.xpose.msra.mxu0 0.0
    %466 = vmatprep.subr.mxu0 0.0
    %467 = vmatpush1.xpose.msra.mxu0 0.0
    %468 = vmatprep.subr.mxu0 0.0
    %469 = vmatpush1.xpose.msra.mxu0 0.0
    %470 = vmatprep.subr.mxu0 0.0
    %471 = vmatpush1.xpose.msra.mxu0 0.0
    %472 = vmatprep.subr.mxu0 0.0
    %473 = vmatpush1.xpose.msra.mxu0 0.0
    %474 = vmatprep.subr.mxu0 0.0
    %475 = vmatpush1.xpose.msra.mxu0 0.0
    %476 = vmatprep.subr.mxu0 0.0
    %477 = vmatpush1.xpose.msra.mxu0 0.0
    %478 = vmatprep.subr.mxu0 0.0
    %479 = vmatpush1.xpose.msra.mxu0 0.0
    %480 = vmatprep.subr.mxu0 0.0
    %481 = vmatpush1.xpose.msra.mxu0 0.0
    %482 = vmatprep.subr.mxu0 0.0
    %483 = vmatpush1.xpose.msra.mxu0 0.0
    %484 = vmatprep.subr.mxu0 0.0
    %485 = vmatpush1.xpose.msra.mxu0 0.0
    %486 = vmatprep.subr.mxu0 0.0
    %487 = vmatpush1.xpose.msra.mxu0 0.0
    %488 = vmatprep.subr.mxu0 0.0
    %489 = vmatpush1.xpose.msra.mxu0 0.0
    %490 = vmatprep.subr.mxu0 0.0
    %491 = vmatpush1.xpose.msra.mxu0 0.0
    %492 = vmatprep.subr.mxu0 0.0
    %493 = vmatpush1.xpose.msra.mxu0 0.0
    %494 = vmatprep.mubr.f32.mxu0 0.0
    %495 = vmatmul.mubr.f32.gmra.mrb[0].mxu0 %v425
    %v496 = vpop.f32.mrb[0].mxu0
    %v497 = vadd.f32 0.0, %v496
    %v498 = vpop.f32.mrb[0].mxu0
    %499 = vmatprep.mubr.f32.mxu0 0.0
    %500 = vmatmul.mubr.f32.gmra.mrb[0].mxu0 %v428
    %v501 = vpop.f32.mrb[0].mxu0
    %v502 = vadd.f32 0.0, %v501
    %v503 = vpop.f32.mrb[0].mxu0
    %504 = vdwg.mxu0
    %vm505 = vcmask 64512
    %v506 = vsel %vm505, %v497, -inf
    %507 = vmax.xlane.f32.xlu0 %v506
    %v508 = vpop.xlane.xlu0 %507
    %v509 = vsel %vm505, %v502, -inf
    %510 = vmax.xlane.f32.xlu0 %v509
    %v511 = vpop.xlane.xlu0 %510
    %v512 = vsub.f32 %v497, %v508
    %v513 = vsub.f32 %v502, %v511
    %v514 = vmul.f32 %v512, 1.442695
    %v515 = vpow.pop %v514
    %v516 = vmul.f32 %v513, 1.442695
    %v517 = vpow.pop %v516
    %v518 = vsel %vm505, %v515, 0.0
    %519 = vadd.xlane.f32.xlu0 %v518
    %v520 = vpop.xlane.xlu0 %519
    %v521 = vsel %vm505, %v517, 0.0
    %522 = vadd.xlane.f32.xlu0 %v521
    %v523 = vpop.xlane.xlu0 %522
    %v524 = vrcp.pop %v520
    %v525 = vrcp.pop %v523
    %v526 = vmul.f32 %v515, %v524
    %v527 = vmul.f32 %v517, %v525
    %v529 = vsel %vm70, %v326, 0
    %v532 = vsel %vm70, %v331, 0
    %534 = vmatprep.subr.mxu0 0.0
    %535 = vmatpush1.xpose.msra.mxu0 %v174
    %536 = vmatprep.subr.mxu0 0.0
    %537 = vmatpush1.xpose.msra.mxu0 0.0
    %538 = vmatprep.subr.mxu0 0.0
    %539 = vmatpush1.xpose.msra.mxu0 0.0
    %540 = vmatprep.subr.mxu0 0.0
    %541 = vmatpush1.xpose.msra.mxu0 0.0
    %542 = vmatprep.subr.mxu0 0.0
    %543 = vmatpush1.xpose.msra.mxu0 0.0
    %544 = vmatprep.subr.mxu0 0.0
    %545 = vmatpush1.xpose.msra.mxu0 0.0
    %546 = vmatprep.subr.mxu0 0.0
    %547 = vmatpush1.xpose.msra.mxu0 0.0
    %548 = vmatprep.subr.mxu0 0.0
    %549 = vmatpush1.xpose.msra.mxu0 0.0
    %550 = vmatprep.subr.mxu0 0.0
    %551 = vmatpush1.xpose.msra.mxu0 0.0
    %552 = vmatprep.subr.mxu0 0.0
    %553 = vmatpush1.xpose.msra.mxu0 0.0
    %554 = vmatprep.subr.mxu0 0.0
    %555 = vmatpush1.xpose.msra.mxu0 0.0
    %556 = vmatprep.subr.mxu0 0.0
    %557 = vmatpush1.xpose.msra.mxu0 0.0
    %558 = vmatprep.subr.mxu0 0.0
    %559 = vmatpush1.xpose.msra.mxu0 0.0
    %560 = vmatprep.subr.mxu0 0.0
    %561 = vmatpush1.xpose.msra.mxu0 0.0
    %562 = vmatprep.subr.mxu0 0.0
    %563 = vmatpush1.xpose.msra.mxu0 0.0
    %564 = vmatprep.subr.mxu0 0.0
    %565 = vmatpush1.xpose.msra.mxu0 0.0
    %566 = vmatprep.subr.mxu0 0.0
    %567 = vmatpush1.xpose.msra.mxu0 0.0
    %568 = vmatprep.subr.mxu0 0.0
    %569 = vmatpush1.xpose.msra.mxu0 0.0
    %570 = vmatprep.subr.mxu0 0.0
    %571 = vmatpush1.xpose.msra.mxu0 0.0
    %572 = vmatprep.subr.mxu0 0.0
    %573 = vmatpush1.xpose.msra.mxu0 0.0
    %574 = vmatprep.subr.mxu0 0.0
    %575 = vmatpush1.xpose.msra.mxu0 0.0
    %576 = vmatprep.subr.mxu0 0.0
    %577 = vmatpush1.xpose.msra.mxu0 0.0
    %578 = vmatprep.subr.mxu0 0.0
    %579 = vmatpush1.xpose.msra.mxu0 0.0
    %580 = vmatprep.subr.mxu0 0.0
    %581 = vmatpush1.xpose.msra.mxu0 0.0
    %582 = vmatprep.subr.mxu0 0.0
    %583 = vmatpush1.xpose.msra.mxu0 0.0
    %584 = vmatprep.subr.mxu0 0.0
    %585 = vmatpush1.xpose.msra.mxu0 0.0
    %586 = vmatprep.subr.mxu0 0.0
    %587 = vmatpush1.xpose.msra.mxu0 0.0
    %588 = vmatprep.subr.mxu0 0.0
    %589 = vmatpush1.xpose.msra.mxu0 0.0
    %590 = vmatprep.subr.mxu0 0.0
    %591 = vmatpush1.xpose.msra.mxu0 0.0
    %592 = vmatprep.subr.mxu0 0.0
    %593 = vmatpush1.xpose.msra.mxu0 0.0
    %594 = vmatprep.subr.mxu0 0.0
    %595 = vmatpush1.xpose.msra.mxu0 0.0
    %596 = vmatprep.subr.mxu0 0.0
    %597 = vmatpush1.xpose.msra.mxu0 0.0
    %598 = vmatprep.mubr.f32.mxu0 0.0
    %599 = vmatmul.mubr.f32.gmra.mrb[0].mxu0 %v529
    %v600 = vpop.f32.mrb[0].mxu0
    %v601 = vadd.f32 0.0, %v600
    %v602 = vpop.f32.mrb[0].mxu0
    %603 = vmatprep.mubr.f32.mxu0 0.0
    %604 = vmatmul.mubr.f32.gmra.mrb[0].mxu0 %v532
    %v605 = vpop.f32.mrb[0].mxu0
    %v606 = vadd.f32 0.0, %v605
    %v607 = vpop.f32.mrb[0].mxu0
    %608 = vdwg.mxu0
    %v609 = vsel %vm505, %v601, -inf
    %610 = vmax.xlane.f32.xlu0 %v609
    %v611 = vpop.xlane.xlu0 %610
    %v612 = vsel %vm505, %v606, -inf
    %613 = vmax.xlane.f32.xlu0 %v612
    %v614 = vpop.xlane.xlu0 %613
    %v615 = vsub.f32 %v601, %v611
    %v616 = vsub.f32 %v606, %v614
    %v617 = vmul.f32 %v615, 1.442695
    %v618 = vpow.pop %v617
    %v619 = vmul.f32 %v616, 1.442695
    %v620 = vpow.pop %v619
    %v621 = vsel %vm505, %v618, 0.0
    %622 = vadd.xlane.f32.xlu0 %v621
    %v623 = vpop.xlane.xlu0 %622
    %v624 = vsel %vm505, %v620, 0.0
    %625 = vadd.xlane.f32.xlu0 %v624
    %v626 = vpop.xlane.xlu0 %625
    %v627 = vrcp.pop %v623
    %v628 = vrcp.pop %v626
    %v629 = vmul.f32 %v618, %v627
    %v630 = vmul.f32 %v620, %v628
    %v632 = vsel %vm505, %v629, 0
    %v635 = vsel %vm505, %v630, 0
    %637 = vmatprep.subr.mxu0 0.0
    %638 = vmatpush1.msra.mxu0 %v416
    %639 = vmatprep.subr.mxu0 0.0
    %640 = vmatpush1.msra.mxu0 0.0
    %641 = vmatprep.subr.mxu0 0.0
    %642 = vmatpush1.msra.mxu0 0.0
    %643 = vmatprep.subr.mxu0 0.0
    %644 = vmatpush1.msra.mxu0 0.0
    %645 = vmatprep.subr.mxu0 0.0
    %646 = vmatpush1.msra.mxu0 0.0
    %647 = vmatprep.subr.mxu0 0.0
    %648 = vmatpush1.msra.mxu0 0.0
    %649 = vmatprep.subr.mxu0 0.0
    %650 = vmatpush1.msra.mxu0 0.0
    %651 = vmatprep.subr.mxu0 0.0
    %652 = vmatpush1.msra.mxu0 0.0
    %653 = vmatprep.subr.mxu0 0.0
    %654 = vmatpush1.msra.mxu0 0.0
    %655 = vmatprep.subr.mxu0 0.0
    %656 = vmatpush1.msra.mxu0 0.0
    %657 = vmatprep.subr.mxu0 0.0
    %658 = vmatpush1.msra.mxu0 0.0
    %659 = vmatprep.subr.mxu0 0.0
    %660 = vmatpush1.msra.mxu0 0.0
    %661 = vmatprep.subr.mxu0 0.0
    %662 = vmatpush1.msra.mxu0 0.0
    %663 = vmatprep.subr.mxu0 0.0
    %664 = vmatpush1.msra.mxu0 0.0
    %665 = vmatprep.subr.mxu0 0.0
    %666 = vmatpush1.msra.mxu0 0.0
    %667 = vmatprep.subr.mxu0 0.0
    %668 = vmatpush1.msra.mxu0 0.0
    %669 = vmatprep.subr.mxu0 0.0
    %670 = vmatpush1.msra.mxu0 0.0
    %671 = vmatprep.subr.mxu0 0.0
    %672 = vmatpush1.msra.mxu0 0.0
    %673 = vmatprep.subr.mxu0 0.0
    %674 = vmatpush1.msra.mxu0 0.0
    %675 = vmatprep.subr.mxu0 0.0
    %676 = vmatpush1.msra.mxu0 0.0
    %677 = vmatprep.subr.mxu0 0.0
    %678 = vmatpush1.msra.mxu0 0.0
    %679 = vmatprep.subr.mxu0 0.0
    %680 = vmatpush1.msra.mxu0 0.0
    %681 = vmatprep.subr.mxu0 0.0
    %682 = vmatpush1.msra.mxu0 0.0
    %683 = vmatprep.subr.mxu0 0.0
    %684 = vmatpush1.msra.mxu0 0.0
    %685 = vmatprep.subr.mxu0 0.0
    %686 = vmatpush1.msra.mxu0 0.0
    %687 = vmatprep.subr.mxu0 0.0
    %688 = vmatpush1.msra.mxu0 0.0
    %689 = vmatprep.subr.mxu0 0.0
    %690 = vmatpush1.msra.mxu0 0.0
    %691 = vmatprep.subr.mxu0 0.0
    %692 = vmatpush1.msra.mxu0 0.0
    %693 = vmatprep.subr.mxu0 0.0
    %694 = vmatpush1.msra.mxu0 0.0
    %695 = vmatprep.subr.mxu0 0.0
    %696 = vmatpush1.msra.mxu0 0.0
    %697 = vmatprep.subr.mxu0 0.0
    %698 = vmatpush1.msra.mxu0 0.0
    %699 = vmatprep.subr.mxu0 0.0
    %700 = vmatpush1.msra.mxu0 0.0
    %701 = vmatprep.mubr.f32.mxu0 0.0
    %702 = vmatmul.mubr.f32.gmra.mrb[0].mxu0 %v632
    %v703 = vpop.f32.mrb[0].mxu0
    %v704 = vadd.f32 0.0, %v703
    %v705 = vpop.f32.mrb[0].mxu0
    %706 = vmatprep.mubr.f32.mxu0 0.0
    %707 = vmatmul.mubr.f32.gmra.mrb[0].mxu0 %v635
    %v708 = vpop.f32.mrb[0].mxu0
    %v709 = vadd.f32 0.0, %v708
    %v710 = vpop.f32.mrb[0].mxu0
    %711 = vdwg.mxu0
    %v713 = vsel %vm505, %v526, 0
    %v716 = vsel %vm505, %v527, 0
    %718 = vmatprep.subr.mxu0 0.0
    %719 = vmatpush1.msra.mxu0 %v246
    %720 = vmatprep.subr.mxu0 0.0
    %721 = vmatpush1.msra.mxu0 0.0
    %722 = vmatprep.subr.mxu0 0.0
    %723 = vmatpush1.msra.mxu0 0.0
    %724 = vmatprep.subr.mxu0 0.0
    %725 = vmatpush1.msra.mxu0 0.0
    %726 = vmatprep.subr.mxu0 0.0
    %727 = vmatpush1.msra.mxu0 0.0
    %728 = vmatprep.subr.mxu0 0.0
    %729 = vmatpush1.msra.mxu0 0.0
    %730 = vmatprep.subr.mxu0 0.0
    %731 = vmatpush1.msra.mxu0 0.0
    %732 = vmatprep.subr.mxu0 0.0
    %733 = vmatpush1.msra.mxu0 0.0
    %734 = vmatprep.subr.mxu0 0.0
    %735 = vmatpush1.msra.mxu0 0.0
    %736 = vmatprep.subr.mxu0 0.0
    %737 = vmatpush1.msra.mxu0 0.0
    %738 = vmatprep.subr.mxu0 0.0
    %739 = vmatpush1.msra.mxu0 0.0
    %740 = vmatprep.subr.mxu0 0.0
    %741 = vmatpush1.msra.mxu0 0.0
    %742 = vmatprep.subr.mxu0 0.0
    %743 = vmatpush1.msra.mxu0 0.0
    %744 = vmatprep.subr.mxu0 0.0
    %745 = vmatpush1.msra.mxu0 0.0
    %746 = vmatprep.subr.mxu0 0.0
    %747 = vmatpush1.msra.mxu0 0.0
    %748 = vmatprep.subr.mxu0 0.0
    %749 = vmatpush1.msra.mxu0 0.0
    %750 = vmatprep.subr.mxu0 0.0
    %751 = vmatpush1.msra.mxu0 0.0
    %752 = vmatprep.subr.mxu0 0.0
    %753 = vmatpush1.msra.mxu0 0.0
    %754 = vmatprep.subr.mxu0 0.0
    %755 = vmatpush1.msra.mxu0 0.0
    %756 = vmatprep.subr.mxu0 0.0
    %757 = vmatpush1.msra.mxu0 0.0
    %758 = vmatprep.subr.mxu0 0.0
    %759 = vmatpush1.msra.mxu0 0.0
    %760 = vmatprep.subr.mxu0 0.0
    %761 = vmatpush1.msra.mxu0 0.0
    %762 = vmatprep.subr.mxu0 0.0
    %763 = vmatpush1.msra.mxu0 0.0
    %764 = vmatprep.subr.mxu0 0.0
    %765 = vmatpush1.msra.mxu0 0.0
    %766 = vmatprep.subr.mxu0 0.0
    %767 = vmatpush1.msra.mxu0 0.0
    %768 = vmatprep.subr.mxu0 0.0
    %769 = vmatpush1.msra.mxu0 0.0
    %770 = vmatprep.subr.mxu0 0.0
    %771 = vmatpush1.msra.mxu0 0.0
    %772 = vmatprep.subr.mxu0 0.0
    %773 = vmatpush1.msra.mxu0 0.0
    %774 = vmatprep.subr.mxu0 0.0
    %775 = vmatpush1.msra.mxu0 0.0
    %776 = vmatprep.subr.mxu0 0.0
    %777 = vmatpush1.msra.mxu0 0.0
    %778 = vmatprep.subr.mxu0 0.0
    %779 = vmatpush1.msra.mxu0 0.0
    %780 = vmatprep.subr.mxu0 0.0
    %781 = vmatpush1.msra.mxu0 0.0
    %782 = vmatprep.mubr.f32.mxu0 0.0
    %783 = vmatmul.mubr.f32.gmra.mrb[0].mxu0 %v713
    %v784 = vpop.f32.mrb[0].mxu0
    %v785 = vadd.f32 %v704, %v784
    %v786 = vpop.f32.mrb[0].mxu0
    %787 = vmatprep.mubr.f32.mxu0 0.0
    %788 = vmatmul.mubr.f32.gmra.mrb[0].mxu0 %v716
    %v789 = vpop.f32.mrb[0].mxu0
    %v790 = vadd.f32 %v709, %v789
    %v791 = vpop.f32.mrb[0].mxu0
    %792 = vdwg.mxu0
    %v794 = vsel %vm70, %v160, 0
    %v797 = vsel %vm70, %v165, 0
    %799 = vmatprep.subr.mxu0 0.0
    %800 = vmatpush1.xpose.msra.mxu0 %v177
    %801 = vmatprep.subr.mxu0 0.0
    %802 = vmatpush1.xpose.msra.mxu0 0.0
    %803 = vmatprep.subr.mxu0 0.0
    %804 = vmatpush1.xpose.msra.mxu0 0.0
    %805 = vmatprep.subr.mxu0 0.0
    %806 = vmatpush1.xpose.msra.mxu0 0.0
    %807 = vmatprep.subr.mxu0 0.0
    %808 = vmatpush1.xpose.msra.mxu0 0.0
    %809 = vmatprep.subr.mxu0 0.0
    %810 = vmatpush1.xpose.msra.mxu0 0.0
    %811 = vmatprep.subr.mxu0 0.0
    %812 = vmatpush1.xpose.msra.mxu0 0.0
    %813 = vmatprep.subr.mxu0 0.0
    %814 = vmatpush1.xpose.msra.mxu0 0.0
    %815 = vmatprep.subr.mxu0 0.0
    %816 = vmatpush1.xpose.msra.mxu0 0.0
    %817 = vmatprep.subr.mxu0 0.0
    %818 = vmatpush1.xpose.msra.mxu0 0.0
    %819 = vmatprep.subr.mxu0 0.0
    %820 = vmatpush1.xpose.msra.mxu0 0.0
    %821 = vmatprep.subr.mxu0 0.0
    %822 = vmatpush1.xpose.msra.mxu0 0.0
    %823 = vmatprep.subr.mxu0 0.0
    %824 = vmatpush1.xpose.msra.mxu0 0.0
    %825 = vmatprep.subr.mxu0 0.0
    %826 = vmatpush1.xpose.msra.mxu0 0.0
    %827 = vmatprep.subr.mxu0 0.0
    %828 = vmatpush1.xpose.msra.mxu0 0.0
    %829 = vmatprep.subr.mxu0 0.0
    %830 = vmatpush1.xpose.msra.mxu0 0.0
    %831 = vmatprep.subr.mxu0 0.0
    %832 = vmatpush1.xpose.msra.mxu0 0.0
    %833 = vmatprep.subr.mxu0 0.0
    %834 = vmatpush1.xpose.msra.mxu0 0.0
    %835 = vmatprep.subr.mxu0 0.0
    %836 = vmatpush1.xpose.msra.mxu0 0.0
    %837 = vmatprep.subr.mxu0 0.0
    %838 = vmatpush1.xpose.msra.mxu0 0.0
    %839 = vmatprep.subr.mxu0 0.0
    %840 = vmatpush1.xpose.msra.mxu0 0.0
    %841 = vmatprep.subr.mxu0 0.0
    %842 = vmatpush1.xpose.msra.mxu0 0.0
    %843 = vmatprep.subr.mxu0 0.0
    %844 = vmatpush1.xpose.msra.mxu0 0.0
    %845 = vmatprep.subr.mxu0 0.0
    %846 = vmatpush1.xpose.msra.mxu0 0.0
    %847 = vmatprep.subr.mxu0 0.0
    %848 = vmatpush1.xpose.msra.mxu0 0.0
    %849 = vmatprep.subr.mxu0 0.0
    %850 = vmatpush1.xpose.msra.mxu0 0.0
    %851 = vmatprep.subr.mxu0 0.0
    %852 = vmatpush1.xpose.msra.mxu0 0.0
    %853 = vmatprep.subr.mxu0 0.0
    %854 = vmatpush1.xpose.msra.mxu0 0.0
    %855 = vmatprep.subr.mxu0 0.0
    %856 = vmatpush1.xpose.msra.mxu0 0.0
    %857 = vmatprep.subr.mxu0 0.0
    %858 = vmatpush1.xpose.msra.mxu0 0.0
    %859 = vmatprep.subr.mxu0 0.0
    %860 = vmatpush1.xpose.msra.mxu0 0.0
    %861 = vmatprep.subr.mxu0 0.0
    %862 = vmatpush1.xpose.msra.mxu0 0.0
    %863 = vmatprep.mubr.f32.mxu0 0.0
    %864 = vmatmul.mubr.f32.gmra.mrb[0].mxu0 %v794
    %v865 = vpop.f32.mrb[0].mxu0
    %v866 = vadd.f32 0.0, %v865
    %v867 = vpop.f32.mrb[0].mxu0
    %868 = vmatprep.mubr.f32.mxu0 0.0
    %869 = vmatmul.mubr.f32.gmra.mrb[0].mxu0 %v797
    %v870 = vpop.f32.mrb[0].mxu0
    %v871 = vadd.f32 0.0, %v870
    %v872 = vpop.f32.mrb[0].mxu0
    %873 = vdwg.mxu0
    %v874 = vsel %vm505, %v866, -inf
    %875 = vmax.xlane.f32.xlu0 %v874
    %v876 = vpop.xlane.xlu0 %875
    %v877 = vsel %vm505, %v871, -inf
    %878 = vmax.xlane.f32.xlu0 %v877
    %v879 = vpop.xlane.xlu0 %878
    %v880 = vsub.f32 %v866, %v876
    %v881 = vsub.f32 %v871, %v879
    %v882 = vmul.f32 %v880, 1.442695
    %v883 = vpow.pop %v882
    %v884 = vmul.f32 %v881, 1.442695
    %v885 = vpow.pop %v884
    %v886 = vsel %vm505, %v883, 0.0
    %887 = vadd.xlane.f32.xlu0 %v886
    %v888 = vpop.xlane.xlu0 %887
    %v889 = vsel %vm505, %v885, 0.0
    %890 = vadd.xlane.f32.xlu0 %v889
    %v891 = vpop.xlane.xlu0 %890
    %v892 = vrcp.pop %v888
    %v893 = vrcp.pop %v891
    %v894 = vmul.f32 %v883, %v892
    %v895 = vmul.f32 %v885, %v893
    %v897 = vsel %vm70, %v336, 0
    %v900 = vsel %vm70, %v341, 0
    %902 = vmatprep.subr.mxu0 0.0
    %903 = vmatpush1.xpose.msra.mxu0 %v177
    %904 = vmatprep.subr.mxu0 0.0
    %905 = vmatpush1.xpose.msra.mxu0 0.0
    %906 = vmatprep.subr.mxu0 0.0
    %907 = vmatpush1.xpose.msra.mxu0 0.0
    %908 = vmatprep.subr.mxu0 0.0
    %909 = vmatpush1.xpose.msra.mxu0 0.0
    %910 = vmatprep.subr.mxu0 0.0
    %911 = vmatpush1.xpose.msra.mxu0 0.0
    %912 = vmatprep.subr.mxu0 0.0
    %913 = vmatpush1.xpose.msra.mxu0 0.0
    %914 = vmatprep.subr.mxu0 0.0
    %915 = vmatpush1.xpose.msra.mxu0 0.0
    %916 = vmatprep.subr.mxu0 0.0
    %917 = vmatpush1.xpose.msra.mxu0 0.0
    %918 = vmatprep.subr.mxu0 0.0
    %919 = vmatpush1.xpose.msra.mxu0 0.0
    %920 = vmatprep.subr.mxu0 0.0
    %921 = vmatpush1.xpose.msra.mxu0 0.0
    %922 = vmatprep.subr.mxu0 0.0
    %923 = vmatpush1.xpose.msra.mxu0 0.0
    %924 = vmatprep.subr.mxu0 0.0
    %925 = vmatpush1.xpose.msra.mxu0 0.0
    %926 = vmatprep.subr.mxu0 0.0
    %927 = vmatpush1.xpose.msra.mxu0 0.0
    %928 = vmatprep.subr.mxu0 0.0
    %929 = vmatpush1.xpose.msra.mxu0 0.0
    %930 = vmatprep.subr.mxu0 0.0
    %931 = vmatpush1.xpose.msra.mxu0 0.0
    %932 = vmatprep.subr.mxu0 0.0
    %933 = vmatpush1.xpose.msra.mxu0 0.0
    %934 = vmatprep.subr.mxu0 0.0
    %935 = vmatpush1.xpose.msra.mxu0 0.0
    %936 = vmatprep.subr.mxu0 0.0
    %937 = vmatpush1.xpose.msra.mxu0 0.0
    %938 = vmatprep.subr.mxu0 0.0
    %939 = vmatpush1.xpose.msra.mxu0 0.0
    %940 = vmatprep.subr.mxu0 0.0
    %941 = vmatpush1.xpose.msra.mxu0 0.0
    %942 = vmatprep.subr.mxu0 0.0
    %943 = vmatpush1.xpose.msra.mxu0 0.0
    %944 = vmatprep.subr.mxu0 0.0
    %945 = vmatpush1.xpose.msra.mxu0 0.0
    %946 = vmatprep.subr.mxu0 0.0
    %947 = vmatpush1.xpose.msra.mxu0 0.0
    %948 = vmatprep.subr.mxu0 0.0
    %949 = vmatpush1.xpose.msra.mxu0 0.0
    %950 = vmatprep.subr.mxu0 0.0
    %951 = vmatpush1.xpose.msra.mxu0 0.0
    %952 = vmatprep.subr.mxu0 0.0
    %953 = vmatpush1.xpose.msra.mxu0 0.0
    %954 = vmatprep.subr.mxu0 0.0
    %955 = vmatpush1.xpose.msra.mxu0 0.0
    %956 = vmatprep.subr.mxu0 0.0
    %957 = vmatpush1.xpose.msra.mxu0 0.0
    %958 = vmatprep.subr.mxu0 0.0
    %959 = vmatpush1.xpose.msra.mxu0 0.0
    %960 = vmatprep.subr.mxu0 0.0
    %961 = vmatpush1.xpose.msra.mxu0 0.0
    %962 = vmatprep.subr.mxu0 0.0
    %963 = vmatpush1.xpose.msra.mxu0 0.0
    %964 = vmatprep.subr.mxu0 0.0
    %965 = vmatpush1.xpose.msra.mxu0 0.0
    %966 = vmatprep.mubr.f32.mxu0 0.0
    %967 = vmatmul.mubr.f32.gmra.mrb[0].mxu0 %v897
    %v968 = vpop.f32.mrb[0].mxu0
    %v969 = vadd.f32 0.0, %v968
    %v970 = vpop.f32.mrb[0].mxu0
    %971 = vmatprep.mubr.f32.mxu0 0.0
    %972 = vmatmul.mubr.f32.gmra.mrb[0].mxu0 %v900
    %v973 = vpop.f32.mrb[0].mxu0
    %v974 = vadd.f32 0.0, %v973
    %v975 = vpop.f32.mrb[0].mxu0
    %976 = vdwg.mxu0
    %v977 = vsel %vm505, %v969, -inf
    %978 = vmax.xlane.f32.xlu0 %v977
    %v979 = vpop.xlane.xlu0 %978
    %v980 = vsel %vm505, %v974, -inf
    %981 = vmax.xlane.f32.xlu0 %v980
    %v982 = vpop.xlane.xlu0 %981
    %v983 = vsub.f32 %v969, %v979
    %v984 = vsub.f32 %v974, %v982
    %v985 = vmul.f32 %v983, 1.442695
    %v986 = vpow.pop %v985
    %v987 = vmul.f32 %v984, 1.442695
    %v988 = vpow.pop %v987
    %v989 = vsel %vm505, %v986, 0.0
    %990 = vadd.xlane.f32.xlu0 %v989
    %v991 = vpop.xlane.xlu0 %990
    %v992 = vsel %vm505, %v988, 0.0
    %993 = vadd.xlane.f32.xlu0 %v992
    %v994 = vpop.xlane.xlu0 %993
    %v995 = vrcp.pop %v991
    %v996 = vrcp.pop %v994
    %v997 = vmul.f32 %v986, %v995
    %v998 = vmul.f32 %v988, %v996
    %v1000 = vsel %vm505, %v997, 0
    %v1003 = vsel %vm505, %v998, 0
    %1005 = vmatprep.subr.mxu0 0.0
    %1006 = vmatpush1.msra.mxu0 %v421
    %1007 = vmatprep.subr.mxu0 0.0
    %1008 = vmatpush1.msra.mxu0 0.0
    %1009 = vmatprep.subr.mxu0 0.0
    %1010 = vmatpush1.msra.mxu0 0.0
    %1011 = vmatprep.subr.mxu0 0.0
    %1012 = vmatpush1.msra.mxu0 0.0
    %1013 = vmatprep.subr.mxu0 0.0
    %1014 = vmatpush1.msra.mxu0 0.0
    %1015 = vmatprep.subr.mxu0 0.0
    %1016 = vmatpush1.msra.mxu0 0.0
    %1017 = vmatprep.subr.mxu0 0.0
    %1018 = vmatpush1.msra.mxu0 0.0
    %1019 = vmatprep.subr.mxu0 0.0
    %1020 = vmatpush1.msra.mxu0 0.0
    %1021 = vmatprep.subr.mxu0 0.0
    %1022 = vmatpush1.msra.mxu0 0.0
    %1023 = vmatprep.subr.mxu0 0.0
    %1024 = vmatpush1.msra.mxu0 0.0
    %1025 = vmatprep.subr.mxu0 0.0
    %1026 = vmatpush1.msra.mxu0 0.0
    %1027 = vmatprep.subr.mxu0 0.0
    %1028 = vmatpush1.msra.mxu0 0.0
    %1029 = vmatprep.subr.mxu0 0.0
    %1030 = vmatpush1.msra.mxu0 0.0
    %1031 = vmatprep.subr.mxu0 0.0
    %1032 = vmatpush1.msra.mxu0 0.0
    %1033 = vmatprep.subr.mxu0 0.0
    %1034 = vmatpush1.msra.mxu0 0.0
    %1035 = vmatprep.subr.mxu0 0.0
    %1036 = vmatpush1.msra.mxu0 0.0
    %1037 = vmatprep.subr.mxu0 0.0
    %1038 = vmatpush1.msra.mxu0 0.0
    %1039 = vmatprep.subr.mxu0 0.0
    %1040 = vmatpush1.msra.mxu0 0.0
    %1041 = vmatprep.subr.mxu0 0.0
    %1042 = vmatpush1.msra.mxu0 0.0
    %1043 = vmatprep.subr.mxu0 0.0
    %1044 = vmatpush1.msra.mxu0 0.0
    %1045 = vmatprep.subr.mxu0 0.0
    %1046 = vmatpush1.msra.mxu0 0.0
    %1047 = vmatprep.subr.mxu0 0.0
    %1048 = vmatpush1.msra.mxu0 0.0
    %1049 = vmatprep.subr.mxu0 0.0
    %1050 = vmatpush1.msra.mxu0 0.0
    %1051 = vmatprep.subr.mxu0 0.0
    %1052 = vmatpush1.msra.mxu0 0.0
    %1053 = vmatprep.subr.mxu0 0.0
    %1054 = vmatpush1.msra.mxu0 0.0
    %1055 = vmatprep.subr.mxu0 0.0
    %1056 = vmatpush1.msra.mxu0 0.0
    %1057 = vmatprep.subr.mxu0 0.0
    %1058 = vmatpush1.msra.mxu0 0.0
    %1059 = vmatprep.subr.mxu0 0.0
    %1060 = vmatpush1.msra.mxu0 0.0
    %1061 = vmatprep.subr.mxu0 0.0
    %1062 = vmatpush1.msra.mxu0 0.0
    %1063 = vmatprep.subr.mxu0 0.0
    %1064 = vmatpush1.msra.mxu0 0.0
    %1065 = vmatprep.subr.mxu0 0.0
    %1066 = vmatpush1.msra.mxu0 0.0
    %1067 = vmatprep.subr.mxu0 0.0
    %1068 = vmatpush1.msra.mxu0 0.0
    %1069 = vmatprep.mubr.f32.mxu0 0.0
    %1070 = vmatmul.mubr.f32.gmra.mrb[0].mxu0 %v1000
    %v1071 = vpop.f32.mrb[0].mxu0
    %v1072 = vadd.f32 0.0, %v1071
    %v1073 = vpop.f32.mrb[0].mxu0
    %1074 = vmatprep.mubr.f32.mxu0 0.0
    %1075 = vmatmul.mubr.f32.gmra.mrb[0].mxu0 %v1003
    %v1076 = vpop.f32.mrb[0].mxu0
    %v1077 = vadd.f32 0.0, %v1076
    %v1078 = vpop.f32.mrb[0].mxu0
    %1079 = vdwg.mxu0
    %v1081 = vsel %vm505, %v894, 0
    %v1084 = vsel %vm505, %v895, 0
    %1086 = vmatprep.subr.mxu0 0.0
    %1087 = vmatpush1.msra.mxu0 %v251
    %1088 = vmatprep.subr.mxu0 0.0
    %1089 = vmatpush1.msra.mxu0 0.0
    %1090 = vmatprep.subr.mxu0 0.0
    %1091 = vmatpush1.msra.mxu0 0.0
    %1092 = vmatprep.subr.mxu0 0.0
    %1093 = vmatpush1.msra.mxu0 0.0
    %1094 = vmatprep.subr.mxu0 0.0
    %1095 = vmatpush1.msra.mxu0 0.0
    %1096 = vmatprep.subr.mxu0 0.0
    %1097 = vmatpush1.msra.mxu0 0.0
    %1098 = vmatprep.subr.mxu0 0.0
    %1099 = vmatpush1.msra.mxu0 0.0
    %1100 = vmatprep.subr.mxu0 0.0
    %1101 = vmatpush1.msra.mxu0 0.0
    %1102 = vmatprep.subr.mxu0 0.0
    %1103 = vmatpush1.msra.mxu0 0.0
    %1104 = vmatprep.subr.mxu0 0.0
    %1105 = vmatpush1.msra.mxu0 0.0
    %1106 = vmatprep.subr.mxu0 0.0
    %1107 = vmatpush1.msra.mxu0 0.0
    %1108 = vmatprep.subr.mxu0 0.0
    %1109 = vmatpush1.msra.mxu0 0.0
    %1110 = vmatprep.subr.mxu0 0.0
    %1111 = vmatpush1.msra.mxu0 0.0
    %1112 = vmatprep.subr.mxu0 0.0
    %1113 = vmatpush1.msra.mxu0 0.0
    %1114 = vmatprep.subr.mxu0 0.0
    %1115 = vmatpush1.msra.mxu0 0.0
    %1116 = vmatprep.subr.mxu0 0.0
    %1117 = vmatpush1.msra.mxu0 0.0
    %1118 = vmatprep.subr.mxu0 0.0
    %1119 = vmatpush1.msra.mxu0 0.0
    %1120 = vmatprep.subr.mxu0 0.0
    %1121 = vmatpush1.msra.mxu0 0.0
    %1122 = vmatprep.subr.mxu0 0.0
    %1123 = vmatpush1.msra.mxu0 0.0
    %1124 = vmatprep.subr.mxu0 0.0
    %1125 = vmatpush1.msra.mxu0 0.0
    %1126 = vmatprep.subr.mxu0 0.0
    %1127 = vmatpush1.msra.mxu0 0.0
    %1128 = vmatprep.subr.mxu0 0.0
    %1129 = vmatpush1.msra.mxu0 0.0
    %1130 = vmatprep.subr.mxu0 0.0
    %1131 = vmatpush1.msra.mxu0 0.0
    %1132 = vmatprep.subr.mxu0 0.0
    %1133 = vmatpush1.msra.mxu0 0.0
    %1134 = vmatprep.subr.mxu0 0.0
    %1135 = vmatpush1.msra.mxu0 0.0
    %1136 = vmatprep.subr.mxu0 0.0
    %1137 = vmatpush1.msra.mxu0 0.0
    %1138 = vmatprep.subr.mxu0 0.0
    %1139 = vmatpush1.msra.mxu0 0.0
    %1140 = vmatprep.subr.mxu0 0.0
    %1141 = vmatpush1.msra.mxu0 0.0
    %1142 = vmatprep.subr.mxu0 0.0
    %1143 = vmatpush1.msra.mxu0 0.0
    %1144 = vmatprep.subr.mxu0 0.0
    %1145 = vmatpush1.msra.mxu0 0.0
    %1146 = vmatprep.subr.mxu0 0.0
    %1147 = vmatpush1.msra.mxu0 0.0
    %1148 = vmatprep.subr.mxu0 0.0
    %1149 = vmatpush1.msra.mxu0 0.0
    %1150 = vmatprep.mubr.f32.mxu0 0.0
    %1151 = vmatmul.mubr.f32.gmra.mrb[0].mxu0 %v1081
    %v1152 = vpop.f32.mrb[0].mxu0
    %v1153 = vadd.f32 %v1072, %v1152
    %v1154 = vpop.f32.mrb[0].mxu0
    %1155 = vmatprep.mubr.f32.mxu0 0.0
    %1156 = vmatmul.mubr.f32.gmra.mrb[0].mxu0 %v1084
    %v1157 = vpop.f32.mrb[0].mxu0
    %v1158 = vadd.f32 %v1077, %v1157
    %v1159 = vpop.f32.mrb[0].mxu0
    %1160 = vdwg.mxu0
    %v1161 = vlaneseq
    %v1162 = vshrl.u32 %v1161, 7
    %v1163 = vsub.s32 0, %v1162
    %v1164 = vrot.slane %v65, %v1163
    %v1165 = vadd.f32 %v785, %v1164
    %v1166 = vadd.f32 %v790, %v1164
    %v1167 = vadd.f32 %v1153, %v1164
    %v1168 = vadd.f32 %v1158, %v1164
    %1169 = vst.msk [vmem:[#allocation8] sm:$0xff] %vm70, %v1165
    %1170 = vst.msk [vmem:[#allocation8 + $0x8] sm:$0xff] %vm70, %v1166
    %1171 = vst.msk [vmem:[#allocation8 + $0x10] sm:$0xff] %vm70, %v1167
    %1172 = vst.msk [vmem:[#allocation8 + $0x18] sm:$0xff] %vm70, %v1168
    %1173 = vst.msk [vmem:[%s4] sm:$0xff] %vm505, %v526
    %1174 = vst.msk [vmem:[%s4 + $0x8] sm:$0xff] %vm505, %v527
    %1175 = vst.msk [vmem:[%s4 + $0x10] sm:$0xff] %vm505, %v629
    %1176 = vst.msk [vmem:[%s4 + $0x18] sm:$0xff] %vm505, %v630
    %1177 = vst.msk [vmem:[%s4 + $0x20] sm:$0xff] %vm505, %v894
    %1178 = vst.msk [vmem:[%s4 + $0x28] sm:$0xff] %vm505, %v895
    %1179 = vst.msk [vmem:[%s4 + $0x30] sm:$0xff] %vm505, %v997
    %1180 = vst.msk [vmem:[%s4 + $0x38] sm:$0xff] %vm505, %v998
    // Predicated region
    $region26: #{tpu_custom_call.1} parent=1 // pred_check
      _
    $region27: #{tpu_custom_call.1} parent=1 // pred_check_branch
      %1182 = sbr.rel (0) target = $region29
    $region28: #{tpu_custom_call.1} parent=1 // pred_region
      %s1184 = ssub.s32 512, 512
      %1185 = vsyncadd [#allocation4], %s1184
      %s1186 = sshll.u32 [#allocation8], 4
      %s1187 = int_to_ptr.vmem [resolvable:$true] %s1186
      %1192 = dma.vmem_to_hbm [thread:$0]  %s1187, 512, %s3, [#allocation4], 128, 128, 8
    $region29: #{tpu_custom_call.1} parent=1 // pred_fallthru
      _
    // Predicated region
    $region30: #{tpu_custom_call.1} parent=1 // pred_check
      _
    $region31: #{tpu_custom_call.1} parent=1 // pred_check_branch
      %1194 = sbr.rel (0) target = $region33
    $region32: #{tpu_custom_call.1} parent=1 // pred_region
      _
    $region33: #{tpu_custom_call.1} parent=1 // pred_fallthru
      _
    // Predicated region
    $region34: #{tpu_custom_call.1} parent=1 // pred_check
      _
    $region35: #{tpu_custom_call.1} parent=1 // pred_check_branch
      %1196 = sbr.rel (0) target = $region37
    $region36: #{tpu_custom_call.1} parent=1 // pred_region
      %1197 = dma.done [#allocation4], 512
    $region37: #{tpu_custom_call.1} parent=1 // pred_fallthru
      _
    // Predicated region
    $region38: #{tpu_custom_call.1} parent=1 // pred_check
      _
    $region39: #{tpu_custom_call.1} parent=1 // pred_check_branch
      %1199 = sbr.rel (0) target = $region41
    $region40: #{tpu_custom_call.1} parent=1 // pred_region
      _
    $region41: #{tpu_custom_call.1} parent=1 // pred_fallthru
      _
    %1200 = vsyncpa [#allocation3], 1
    %1201 = vsyncpa [#allocation6], 1
    %1202 = vsyncpa [#allocation4], 1

</llo_original>
